<compile_context>
chip_gen: v6e
topology: v6e:2x2x1
jax: 0.10.0
libtpu: 0.0.40
codegen_flags: <defaults>
</compile_context>

<pallas_src>
import functools

import jax
import jax.numpy as jnp
from jax.experimental import pallas as pl
from jax.experimental.pallas import tpu as pltpu

BN_EPS = 1e-5
LANE = 128
SUBLANE = 8
VMEM_LIMIT = 32 * 1024 * 1024          # within v7x's scoped default / 64 MiB physical
VMEM_TILE_BUDGET = 24 * 1024 * 1024    # headroom for weights / scale / shift / scratch


def _round_up(x, m):
    return ((x + m - 1) // m) * m


def _choose_tile_l(L_out, K, c_pad):
    """Lane-axis tile: large (few grid steps) but bounded by the VMEM budget."""
    l128 = _round_up(L_out, LANE)
    # Double-buffered pass-2 footprint per lane column: bf16 patches block + f32 out block.
    per_col = 2 * (K * 2 + c_pad * 4)
    budget_cols = max(LANE, (VMEM_TILE_BUDGET // per_col) // LANE * LANE)
    tile = min(4096, l128, budget_cols)
    l_pad = _round_up(L_out, tile)
    return tile, l_pad


def _im2col_T(x, k, s, p):
    """x: (N, C, L) -> patches: (N, C*k, L_out) bf16, row index ci*k + j (matches weight.reshape)."""
    # TODO(synk): for large k/in_c, fold this into the kernel as k shifted matmuls over x to
    # avoid materializing the k-times-expanded patches array in HBM.
    N, C, L = x.shape
    x_pad = jnp.pad(x, ((0, 0), (0, 0), (p, p)))
    Lp = L + 2 * p
    L_out = (Lp - k) // s + 1
    cols = [jax.lax.slice_in_dim(x_pad, j, j + s * (L_out - 1) + 1, stride=s, axis=2)
            for j in range(k)]                                    # each (N, C, L_out)
    patches = jnp.stack(cols, axis=2).reshape(N, C * k, L_out)    # (N, C*k, L_out)
    return patches.astype(jnp.bfloat16), L_out


def _stats_kernel(p_ref, w_ref, sum_ref, sq_ref):
    """Per (batch, L-tile): recompute conv tile on MXU, emit partial per-channel sum / sumsq."""
    # p_ref: (1, K, tile_l) bf16, w_ref: (c_pad, K) bf16 -> y: (c_pad, tile_l) f32.
    # Zero-padded lane columns contribute exactly 0 to both sums, so no masking is needed.
    y = jnp.dot(w_ref[...], p_ref[0], preferred_element_type=jnp.float32)
    sum_ref[0, 0] = jnp.sum(y, axis=1, keepdims=True)        # (c_pad, 1)
    sq_ref[0, 0] = jnp.sum(y * y, axis=1, keepdims=True)     # (c_pad, 1)


def _bn_relu_kernel(p_ref, w_ref, a_ref, c_ref, o_ref):
    """Per (batch, L-tile): recompute conv tile, apply fused BN FMA + ReLU, lane-dense store."""
    y = jnp.dot(w_ref[...], p_ref[0], preferred_element_type=jnp.float32)  # (c_pad, tile_l)
    o_ref[0] = jnp.maximum(y * a_ref[...] + c_ref[...], 0.0).astype(o_ref.dtype)


def conv_block_forward(x, weight, bias, gamma, beta, *, k, s=1, p=0):
    """x: (N, in_c, L) NCL.  weight: (out_c, in_c, k).  Returns (N, out_c, L_out) f32."""
    # Conv bias cancels exactly under training-mode BatchNorm mean subtraction.
    del bias
    N, in_c, L = x.shape
    out_c = weight.shape[0]
    K = in_c * k

    patches, L_out = _im2col_T(x, k, s, p)                    # (N, K, L_out) bf16
    c_pad = _round_up(out_c, SUBLANE)                         # channels on sublanes (pad to 8)
    tile_l, l_pad = _choose_tile_l(L_out, K, c_pad)
    n_l = l_pad // tile_l
    if l_pad != L_out:
        patches = jnp.pad(patches, ((0, 0), (0, 0), (0, l_pad - L_out)))

    w2d = jnp.pad(weight.reshape(out_c, K),
                  ((0, c_pad - out_c), (0, 0))).astype(jnp.bfloat16)       # (c_pad, K)

    # ---- Pass 1: per-tile partial batch statistics (fully parallel grid). ----
    sums, sqs = pl.pallas_call(
        _stats_kernel,
        out_shape=(jax.ShapeDtypeStruct((N, n_l, c_pad, 1), jnp.float32),
                   jax.ShapeDtypeStruct((N, n_l, c_pad, 1), jnp.float32)),
        grid_spec=pltpu.PrefetchScalarGridSpec(
            num_scalar_prefetch=0,
            grid=(N, n_l),
            in_specs=[
                pl.BlockSpec((1, K, tile_l), lambda n, l: (n, 0, l)),
                pl.BlockSpec((c_pad, K), lambda n, l: (0, 0)),
            ],
            out_specs=[
                pl.BlockSpec((1, 1, c_pad, 1), lambda n, l: (n, l, 0, 0)),
                pl.BlockSpec((1, 1, c_pad, 1), lambda n, l: (n, l, 0, 0)),
            ],
        ),
        compiler_params=pltpu.CompilerParams(
            dimension_semantics=("parallel", "parallel"),
            vmem_limit_bytes=VMEM_LIMIT),
        cost_estimate=pl.CostEstimate(
            flops=2 * N * l_pad * K * c_pad + 3 * N * l_pad * c_pad,
            transcendentals=0,
            bytes_accessed=N * K * l_pad * 2 + K * c_pad * 2 + 2 * N * n_l * c_pad * 4),
    )(patches, w2d)

    # ---- Fold partials and derive the fused BN scale/shift once (tiny XLA op). ----
    m_true = jnp.float32(N * L_out)
    s1 = jnp.sum(sums, axis=(0, 1))                           # (c_pad, 1)
    s2 = jnp.sum(sqs, axis=(0, 1))                            # (c_pad, 1)
    mean = s1 / m_true
    var = jnp.maximum(s2 / m_true - mean * mean, 0.0)         # clamp hides f32 cancellation
    g = jnp.pad(gamma.astype(jnp.float32), (0, c_pad - out_c)).reshape(c_pad, 1)
    b = jnp.pad(beta.astype(jnp.float32), (0, c_pad - out_c)).reshape(c_pad, 1)
    a_vec = g * jax.lax.rsqrt(var + BN_EPS)                   # (c_pad, 1)
    c_vec = b - mean * a_vec                                  # (c_pad, 1)

    # ---- Pass 2: recompute conv matmul, fused BN FMA + ReLU, write NCL layout directly. ----
    out = pl.pallas_call(
        _bn_relu_kernel,
        out_shape=jax.ShapeDtypeStruct((N, c_pad, l_pad), jnp.float32),
        grid_spec=pltpu.PrefetchScalarGridSpec(
            num_scalar_prefetch=0,
            grid=(N, n_l),
            in_specs=[
                pl.BlockSpec((1, K, tile_l), lambda n, l: (n, 0, l)),
                pl.BlockSpec((c_pad, K), lambda n, l: (0, 0)),
                pl.BlockSpec((c_pad, 1), lambda n, l: (0, 0)),
                pl.BlockSpec((c_pad, 1), lambda n, l: (0, 0)),
            ],
            out_specs=pl.BlockSpec((1, c_pad, tile_l), lambda n, l: (n, 0, l)),
        ),
        compiler_params=pltpu.CompilerParams(
            dimension_semantics=("parallel", "parallel"),
            vmem_limit_bytes=VMEM_LIMIT),
        cost_estimate=pl.CostEstimate(
            flops=2 * N * l_pad * K * c_pad + 3 * N * l_pad * c_pad,
            transcendentals=0,
            bytes_accessed=N * K * l_pad * 2 + K * c_pad * 2 + 4 * c_pad * 4
                           + N * c_pad * l_pad * 4),
    )(patches, w2d, a_vec, c_vec)

    if c_pad != out_c or l_pad != L_out:
        out = out[:, :out_c, :L_out]
    return out


if __name__ == "__main__":
    # Shapes consistent with ConvBlock(in_c=4, out_c=8, k=3, s=1, p=1)
    N, in_c, L = 2, 4, 16
    out_c, k, s, p = 8, 3, 1, 1

    key = jax.random.PRNGKey(0)
    kx, kw, kb, kg, kbe = jax.random.split(key, 5)

    x = jax.random.normal(kx, (N, in_c, L), dtype=jnp.float32)
    weight = jax.random.normal(kw, (out_c, in_c, k), dtype=jnp.float32) * 0.1
    bias = jax.random.normal(kb, (out_c,), dtype=jnp.float32) * 0.1
    gamma = 1.0 + 0.1 * jax.random.normal(kg, (out_c,), dtype=jnp.float32)
    beta = 0.1 * jax.random.normal(kbe, (out_c,), dtype=jnp.float32)

    out = conv_block_forward(x, weight, bias, gamma, beta, k=k, s=s, p=p)
    jax.block_until_ready(out)

    # Pure-JAX f32 reference of the same math (Conv1d + bias -> train-mode BN -> ReLU).
    def ref(x, w, b, g, be):
        y = jax.lax.conv_general_dilated(
            x, w, window_strides=(s,), padding=[(p, p)],
            dimension_numbers=("NCH", "OIH", "NCH"))
        y = y + b[None, :, None]
        mean = jnp.mean(y, axis=(0, 2), keepdims=True)
        var = jnp.mean((y - mean) ** 2, axis=(0, 2), keepdims=True)
        yh = (y - mean) / jnp.sqrt(var + BN_EPS)
        return jnp.maximum(yh * g[None, :, None] + be[None, :, None], 0.0)

    expected = ref(x, weight, bias, gamma, beta)
    assert out.shape == expected.shape == (N, out_c, L)
    # Tolerance accounts for bf16 MXU operands (accumulation, stats and BN math stay f32).
    assert jnp.allclose(out, expected, atol=3e-2, rtol=3e-2)

    print("KERNEL_OK")
</pallas_src>

<mosaic_0001>
module attributes {stable_mosaic.version = 11 : i64} {
  func.func @_stats_kernel(%arg0: i32, %arg1: i32, %arg2: memref<1x12x128xbf16, #tpu.memory_space<vmem>>, %arg3: memref<8x12xbf16, #tpu.memory_space<vmem>>, %arg4: memref<1x1x8x1xf32, #tpu.memory_space<vmem>>, %arg5: memref<1x1x8x1xf32, #tpu.memory_space<vmem>>) attributes {dimension_semantics = [#tpu.dimension_semantics<parallel>, #tpu.dimension_semantics<parallel>], iteration_bounds = array<i64: 2, 1>, scalar_prefetch = 0 : i64, scratch_operands = 0 : i64, tpu.core_type = #tpu.core_type<tc>, window_params = [{transform_indices = @transform_0, window_bounds = array<i64: 1, 12, 128>}, {pipeline_mode = #tpu.pipeline_mode<synchronous>, transform_indices = @transform_1, window_bounds = array<i64: 8, 12>}, {transform_indices = @transform_2, window_bounds = array<i64: 1, 1, 8, 1>}, {transform_indices = @transform_3, window_bounds = array<i64: 1, 1, 8, 1>}]} {
    %c0 = arith.constant 0 : index
    %c0_0 = arith.constant 0 : index
    %0 = vector.load %arg3[%c0, %c0_0] : memref<8x12xbf16, #tpu.memory_space<vmem>>, vector<8x12xbf16>
    %c0_1 = arith.constant 0 : index
    %c0_2 = arith.constant 0 : index
    %c0_3 = arith.constant 0 : index
    %1 = vector.load %arg2[%c0_1, %c0_2, %c0_3] : memref<1x12x128xbf16, #tpu.memory_space<vmem>>, vector<1x12x128xbf16>
    %2 = vector.shape_cast %1 : vector<1x12x128xbf16> to vector<12x128xbf16>
    %cst = arith.constant dense<0.000000e+00> : vector<8x128xf32>
    %3 = tpu.matmul %0, %2, %cst {dimension_numbers = #tpu.dot_dimension_numbers<[1], [0], [0], [1], [0, 0, 1, 1], [], []>} : vector<8x12xbf16>, vector<12x128xbf16>, vector<8x128xf32> -> vector<8x128xf32>
    %cst_4 = arith.constant dense<0.000000e+00> : vector<8xf32>
    %4 = vector.multi_reduction <add>, %3, %cst_4 [1] : vector<8x128xf32> to vector<8xf32>
    %5 = vector.shape_cast %4 : vector<8xf32> to vector<8x1xf32>
    %c0_5 = arith.constant 0 : index
    %c0_6 = arith.constant 0 : index
    %c0_7 = arith.constant 0 : index
    %c0_8 = arith.constant 0 : index
    %6 = vector.load %arg4[%c0_5, %c0_6, %c0_7, %c0_8] : memref<1x1x8x1xf32, #tpu.memory_space<vmem>>, vector<1x1x8x1xf32>
    %7 = vector.shape_cast %6 : vector<1x1x8x1xf32> to vector<8x1xf32>
    %8 = vector.shape_cast %5 : vector<8x1xf32> to vector<1x1x8x1xf32>
    tpu.vector_store %arg4[%c0_5, %c0_6, %c0_7, %c0_8], %8 {strides = array<i32>} : memref<1x1x8x1xf32, #tpu.memory_space<vmem>>, vector<1x1x8x1xf32>,
    %9 = arith.mulf %3, %3 : vector<8x128xf32>
    %cst_9 = arith.constant dense<0.000000e+00> : vector<8xf32>
    %10 = vector.multi_reduction <add>, %9, %cst_9 [1] : vector<8x128xf32> to vector<8xf32>
    %11 = vector.shape_cast %10 : vector<8xf32> to vector<8x1xf32>
    %c0_10 = arith.constant 0 : index
    %c0_11 = arith.constant 0 : index
    %c0_12 = arith.constant 0 : index
    %c0_13 = arith.constant 0 : index
    %12 = vector.load %arg5[%c0_10, %c0_11, %c0_12, %c0_13] : memref<1x1x8x1xf32, #tpu.memory_space<vmem>>, vector<1x1x8x1xf32>
    %13 = vector.shape_cast %12 : vector<1x1x8x1xf32> to vector<8x1xf32>
    %14 = vector.shape_cast %11 : vector<8x1xf32> to vector<1x1x8x1xf32>
    tpu.vector_store %arg5[%c0_10, %c0_11, %c0_12, %c0_13], %14 {strides = array<i32>} : memref<1x1x8x1xf32, #tpu.memory_space<vmem>>, vector<1x1x8x1xf32>,
    return
  }
  func.func @transform_0(%arg0: i32, %arg1: i32) -> (i32, i32, i32) {
    %c0_i32 = arith.constant 0 : i32
    %c0_i32_0 = arith.constant 0 : i32
    return %arg0, %c0_i32, %arg1 : i32, i32, i32
  }
  func.func @transform_1(%arg0: i32, %arg1: i32) -> (i32, i32) {
    %c0_i32 = arith.constant 0 : i32
    %c0_i32_0 = arith.constant 0 : i32
    %c0_i32_1 = arith.constant 0 : i32
    return %c0_i32, %c0_i32_0 : i32, i32
  }
  func.func @transform_2(%arg0: i32, %arg1: i32) -> (i32, i32, i32, i32) {
    %c0_i32 = arith.constant 0 : i32
    %c0_i32_0 = arith.constant 0 : i32
    %c0_i32_1 = arith.constant 0 : i32
    return %arg0, %arg1, %c0_i32, %c0_i32_0 : i32, i32, i32, i32
  }
  func.func @transform_3(%arg0: i32, %arg1: i32) -> (i32, i32, i32, i32) {
    %c0_i32 = arith.constant 0 : i32
    %c0_i32_0 = arith.constant 0 : i32
    %c0_i32_1 = arith.constant 0 : i32
    return %arg0, %arg1, %c0_i32, %c0_i32_0 : i32, i32, i32, i32
  }
}

</mosaic_0001>

<llo_original>
// kernel: tpu_custom_call.1
$region0: #{tpu_custom_call.1}
  #allocation0 [shape = 'u32[]', space=smem, size = 0x4, offset = 0x4, fixed_abs, tag = 'smem constant byte address 0x4 - core index']
  #allocation1 [shape = 'u32[144,128]{1,0:T(1,128)}', space=vmem, size = 0x12000, scoped, tag = 'internal scratch']
  %s0 = inlined_call_operand.vmem [shape: bf16[2,12,128], index: 0, kind: input, shape index: {}]
  %s1 = inlined_call_operand.vmem [shape: bf16[8,12], index: 1, kind: input, shape index: {}]
  %s2 = inlined_call_operand.vmem [shape: f32[2,1,8,1], index: 2, kind: output, shape index: {0}]
  %s3 = inlined_call_operand.vmem [shape: f32[2,1,8,1], index: 3, kind: output, shape index: {1}]
  %4 = xla_tuple %s2, %s3
  %s5 = sld [smem:[#allocation0]]
  $region49: #{tpu_custom_call.1} parent=0
    _
  %s7 = ssub.s32 1, %s5
  %s8 = scalar_select 0, %s7, %s5
  loop: start=0, step=1, limit=4
  $region2: #{tpu_custom_call.1} parent=0 // loop_pre_header
    _
  $region3: #{tpu_custom_call.1} parent=0 // loop_header
    %s10 = sphi 0, %s14
    %p11 = scmp.ge.s32.totalorder %s10, 4
    %s17 = sphi 0, %s29
    %s18 = sphi 0, %s25
    %s19 = sphi 0, %s17
    %s20 = sphi 0, %s18
    %s21 = sphi 0, %s19
    %s22 = sphi 0, %s20
    %s34 = sphi 0, %s36
    %s37 = sphi 0, %s34
    %s38 = sphi 0, %s37
    %s54 = sphi 0, %s38
    %s58 = sphi 0, %s58
    %s60 = sphi 0, %s58
    %s61 = sphi 0, %s60
    %s75 = sphi 0, %s61
    %s83 = sphi 0, %s85
    %s86 = sphi 0, %s83
    %s87 = sphi 0, %s86
    %s103 = sphi 0, %s87
    %s111 = sphi 0, %s113
    %s114 = sphi 0, %s111
    %s115 = sphi 0, %s114
    %s131 = sphi 0, %s115
  $region4: #{tpu_custom_call.1} parent=0 // loop_header_branch
    %13 = sbr.rel (%p11) target = $region8
  $region5: #{tpu_custom_call.1} parent=0 // loop_body
    %s15 = ssub.s32 %s10, 1
    %s16 = ssub.s32 %s10, 2
    %s23 = sadd.s32 1, %s18
    %p24 = scmp.ge.s32.totalorder %s23, 1
    %s25 = scalar_select %p24, 0, %s23
    %s26 = sadd.s32 1, %s17
    %s27 = scalar_select %p24, %s26, %s17
    %p28 = scmp.ge.s32.totalorder %s27, 2
    %s29 = scalar_select %p28, 0, %s27
    %s30 = ssub.s32 %s17, %s29
    %s31 = ssub.s32 %s18, %s25
    %s32 = sor.u32 %s30, %s31
    %p33 = scmp.eq.s32.totalorder %s32, 0
    %s35 = sadd.s32 %s34, 1
    %s36 = scalar_select %p33, %s34, %s35
    %p39 = pneg %p33
    %p40 = scmp.eq.s32.totalorder %s10, 1
    %p41 = por %p39, %p40
    %p42 = scmp.ne.s32.totalorder %s34, %s37
    %p43 = scmp.eq.s32.totalorder %s10, 0
    %p44 = por %p42, %p43
    %p45 = scmp.ne.s32.totalorder %s34, %s37
    %p46 = scmp.eq.s32.totalorder %s15, 1
    %p47 = por %p45, %p46
    %p48 = scmp.ne.s32.totalorder %s37, %s38
    %p49 = scmp.eq.s32.totalorder %s15, 0
    %p50 = por %p48, %p49
    %p51 = scmp.ne.s32.totalorder %s37, %s38
    %p52 = scmp.eq.s32.totalorder %s16, 1
    %p53 = por %p51, %p52
    %p55 = scmp.ne.s32.totalorder %s38, %s54
    %p56 = scmp.eq.s32.totalorder %s16, 0
    %p57 = por %p55, %p56
    %s59 = sadd.s32 %s58, 1
    %p62 = scmp.eq.s32.totalorder %s10, 1
    %p63 = scmp.ne.s32.totalorder %s58, %s60
    %p64 = scmp.eq.s32.totalorder %s10, 0
    %p65 = por %p63, %p64
    %p66 = scmp.ne.s32.totalorder %s58, %s60
    %p67 = scmp.eq.s32.totalorder %s15, 1
    %p68 = por %p66, %p67
    %p69 = scmp.ne.s32.totalorder %s60, %s61
    %p70 = scmp.eq.s32.totalorder %s15, 0
    %p71 = por %p69, %p70
    %p72 = scmp.ne.s32.totalorder %s60, %s61
    %p73 = scmp.eq.s32.totalorder %s16, 1
    %p74 = por %p72, %p73
    %p76 = scmp.ne.s32.totalorder %s61, %s75
    %p77 = scmp.eq.s32.totalorder %s16, 0
    %p78 = por %p76, %p77
    %s79 = ssub.s32 %s17, %s29
    %s80 = ssub.s32 %s18, %s25
    %s81 = sor.u32 %s79, %s80
    %p82 = scmp.eq.s32.totalorder %s81, 0
    %s84 = sadd.s32 %s83, 1
    %s85 = scalar_select %p82, %s83, %s84
    %p88 = pneg %p82
    %p89 = scmp.eq.s32.totalorder %s10, 1
    %p90 = por %p88, %p89
    %p91 = scmp.ne.s32.totalorder %s83, %s86
    %p92 = scmp.eq.s32.totalorder %s10, 0
    %p93 = por %p91, %p92
    %p94 = scmp.ne.s32.totalorder %s83, %s86
    %p95 = scmp.eq.s32.totalorder %s15, 1
    %p96 = por %p94, %p95
    %p97 = scmp.ne.s32.totalorder %s86, %s87
    %p98 = scmp.eq.s32.totalorder %s15, 0
    %p99 = por %p97, %p98
    %p100 = scmp.ne.s32.totalorder %s86, %s87
    %p101 = scmp.eq.s32.totalorder %s16, 1
    %p102 = por %p100, %p101
    %p104 = scmp.ne.s32.totalorder %s87, %s103
    %p105 = scmp.eq.s32.totalorder %s16, 0
    %p106 = por %p104, %p105
    %s107 = ssub.s32 %s17, %s29
    %s108 = ssub.s32 %s18, %s25
    %s109 = sor.u32 %s107, %s108
    %p110 = scmp.eq.s32.totalorder %s109, 0
    %s112 = sadd.s32 %s111, 1
    %s113 = scalar_select %p110, %s111, %s112
    %p116 = pneg %p110
    %p117 = scmp.eq.s32.totalorder %s10, 1
    %p118 = por %p116, %p117
    %p119 = scmp.ne.s32.totalorder %s111, %s114
    %p120 = scmp.eq.s32.totalorder %s10, 0
    %p121 = por %p119, %p120
    %p122 = scmp.ne.s32.totalorder %s111, %s114
    %p123 = scmp.eq.s32.totalorder %s15, 1
    %p124 = por %p122, %p123
    %p125 = scmp.ne.s32.totalorder %s114, %s115
    %p126 = scmp.eq.s32.totalorder %s15, 0
    %p127 = por %p125, %p126
    %p128 = scmp.ne.s32.totalorder %s114, %s115
    %p129 = scmp.eq.s32.totalorder %s16, 1
    %p130 = por %p128, %p129
    %p132 = scmp.ne.s32.totalorder %s115, %s131
    %p133 = scmp.eq.s32.totalorder %s16, 0
    %p134 = por %p132, %p133
    %p135 = scmp.le.s32.totalorder 1, %s10
    %p136 = scmp.lt.s32.totalorder %s10, 3
    %p137 = pnand %p135, %p136
    %p138 = pneg %p137
    // Predicated region
    $region9: #{tpu_custom_call.1} parent=5 // pred_check
      _
    $region10: #{tpu_custom_call.1} parent=5 // pred_check_branch
      %140 = sbr.rel (%p137) target = $region12
    $region11: #{tpu_custom_call.1} parent=5 // pred_region
      %s141 = ssub.s32 %s10, 1
      // Predicated region
      $region13: #{tpu_custom_call.1} parent=11 // pred_check
        %p142 = pneg %p71
      $region14: #{tpu_custom_call.1} parent=11 // pred_check_branch
        %144 = sbr.rel (%p142) target = $region16
      $region15: #{tpu_custom_call.1} parent=11 // pred_region
        _
      $region16: #{tpu_custom_call.1} parent=11 // pred_fallthru
        _
    $region12: #{tpu_custom_call.1} parent=5 // pred_fallthru
      _
    %p145 = scmp.lt.s32.totalorder %s10, 2
    // Predicated region
    $region17: #{tpu_custom_call.1} parent=5 // pred_check
      %p146 = pneg %p145
    $region18: #{tpu_custom_call.1} parent=5 // pred_check_branch
      %148 = sbr.rel (%p146) target = $region20
    $region19: #{tpu_custom_call.1} parent=5 // pred_region
      // Predicated region
      $region21: #{tpu_custom_call.1} parent=19 // pred_check
        %p149 = pneg %p44
      $region22: #{tpu_custom_call.1} parent=19 // pred_check_branch
        %151 = sbr.rel (%p149) target = $region24
      $region23: #{tpu_custom_call.1} parent=19 // pred_region
        %p152 = scmp.lt.s32.totalorder %s17, 1
        %s153 = scalar_select %p152, %s17, 1
        %p154 = scmp.lt.s32.totalorder %s18, 0
        %s155 = scalar_select %p154, %s18, 0
        %s156 = smul.addr %s153, 2
        %s157 = sadd.s32 %s155, %s156
        %s158 = smul.addr %s157, 4
        %s159 = scalar_lea.vmem %s0, %s158
      $region24: #{tpu_custom_call.1} parent=19 // pred_fallthru
        _
    $region20: #{tpu_custom_call.1} parent=5 // pred_fallthru
      _
    %p160 = scmp.le.s32.totalorder 1, %s10
    %p161 = scmp.lt.s32.totalorder %s10, 3
    %p162 = pnand %p160, %p161
    %p163 = pneg %p162
    // Predicated region
    $region25: #{tpu_custom_call.1} parent=5 // pred_check
      _
    $region26: #{tpu_custom_call.1} parent=5 // pred_check_branch
      %165 = sbr.rel (%p162) target = $region28
    $region27: #{tpu_custom_call.1} parent=5 // pred_region
      %s166 = ssub.s32 %s10, 1
      %p167 = scmp.lt.s32.totalorder %s19, 1
      %s168 = scalar_select %p167, %s19, 1
      %p169 = scmp.lt.s32.totalorder %s20, 0
      %s170 = scalar_select %p169, %s20, 0
      %s171 = smul.addr %s168, 2
      %s172 = sadd.s32 %s170, %s171
      %s173 = smul.addr %s172, 4
      %s174 = scalar_lea.vmem %s0, %s173
      %p175 = pneg %p50
      %p176 = pneg %p47
      %p177 = pneg %p71
      %p178 = pneg %p68
      %p179 = pneg %p99
      %p180 = pneg %p96
      %p181 = scmp.lt.s32.totalorder %s19, 1
      %s182 = scalar_select %p181, %s19, 1
      %p183 = scmp.lt.s32.totalorder %s20, 0
      %s184 = scalar_select %p183, %s20, 0
      %s185 = sadd.s32 %s184, %s182
      %s186 = smul.addr %s185, 8
      %s187 = scalar_lea.vmem %s2, %s186
      %p188 = pneg %p127
      %p189 = pneg %p124
      %p190 = scmp.lt.s32.totalorder %s19, 1
      %s191 = scalar_select %p190, %s19, 1
      %p192 = scmp.lt.s32.totalorder %s20, 0
      %s193 = scalar_select %p192, %s20, 0
      %s194 = sadd.s32 %s193, %s191
      %s195 = smul.addr %s194, 8
      %s196 = scalar_lea.vmem %s3, %s195
      %p197 = scmp.lt.s32.totalorder %s19, 1
      %s198 = scalar_select %p197, %s19, 1
      %p199 = scmp.lt.s32.totalorder %s20, 0
      %s200 = scalar_select %p199, %s20, 0
      %s201 = smul.addr %s198, 2
      %s202 = sadd.s32 %s200, %s201
      %s203 = smul.addr %s202, 4
      %s204 = scalar_lea.vmem %s0, %s203
      %p205 = scmp.lt.s32.totalorder %s19, 1
      %s206 = scalar_select %p205, %s19, 1
      %p207 = scmp.lt.s32.totalorder %s20, 0
      %s208 = scalar_select %p207, %s20, 0
      %s209 = sadd.s32 %s208, %s206
      %s210 = smul.addr %s209, 8
      %s211 = scalar_lea.vmem %s2, %s210
      %p212 = scmp.lt.s32.totalorder %s19, 1
      %s213 = scalar_select %p212, %s19, 1
      %p214 = scmp.lt.s32.totalorder %s20, 0
      %s215 = scalar_select %p214, %s20, 0
      %s216 = sadd.s32 %s215, %s213
      %s217 = smul.addr %s216, 8
      %s218 = scalar_lea.vmem %s3, %s217
      %v220 = vld [vmem:[%s1] sm:$0xf]
      %v221 = vld [vmem:[%s204] sm:$0xf]
      %v222 = vld [vmem:[%s204 + $0x4] sm:$0x3]
      %v225 = vunpack.c.l.b16 %v221
      %v226 = vunpack.c.l.b16 %v222
      %v227 = vpack.c.b16 %v226, %v225
      %vm228 = vcmask 97280
      %v230 = vsel %vm228, %v220, 0
      %vm232 = vcmask 1045504
      %v234 = vsel %vm232, %v227, 0
      %236 = vmatprep.subr.bf16.mxu0 0
      %237 = vmatpush1.bf16.msra.mxu0 0
      %238 = vmatprep.subr.bf16.mxu0 0
      %239 = vmatpush1.bf16.msra.mxu0 0
      %240 = vmatprep.subr.bf16.mxu0 0
      %241 = vmatpush1.bf16.msra.mxu0 0
      %242 = vmatprep.subr.bf16.mxu0 0
      %243 = vmatpush1.bf16.msra.mxu0 0
      %244 = vmatprep.subr.bf16.mxu0 0
      %245 = vmatpush1.bf16.msra.mxu0 0
      %246 = vmatprep.subr.bf16.mxu0 0
      %247 = vmatpush1.bf16.msra.mxu0 0
      %248 = vmatprep.subr.bf16.mxu0 0
      %249 = vmatpush1.bf16.msra.mxu0 0
      %250 = vmatprep.subr.bf16.mxu0 0
      %251 = vmatpush1.bf16.msra.mxu0 %v234
      %252 = vmatprep.subr.bf16.mxu0 0
      %253 = vmatpush2.bf16.msra.mxu0 0
      %254 = vmatprep.subr.bf16.mxu0 0
      %255 = vmatpush2.bf16.msra.mxu0 0
      %256 = vmatprep.subr.bf16.mxu0 0
      %257 = vmatpush2.bf16.msra.mxu0 0
      %258 = vmatprep.subr.bf16.mxu0 0
      %259 = vmatpush2.bf16.msra.mxu0 0
      %260 = vmatprep.subr.bf16.mxu0 0
      %261 = vmatpush2.bf16.msra.mxu0 0
      %262 = vmatprep.subr.bf16.mxu0 0
      %263 = vmatpush2.bf16.msra.mxu0 0
      %264 = vmatprep.subr.bf16.mxu0 0
      %265 = vmatpush2.bf16.msra.mxu0 0
      %266 = vmatprep.subr.bf16.mxu0 0
      %267 = vmatpush2.bf16.msra.mxu0 0
      %268 = vmatprep.mubr.bf16.mxu0 0
      %269 = vmatmul.mubr.bf16.gmra.mxu0 %v230
      %v270 = vpop.f32.mrf.mxu0
      %v271 = vadd.f32 0.0, %v270
      %v272 = vpop.f32.mrf.mxu0
      %v273 = vpop.f32.mrf.mxu0
      %v274 = vpop.f32.mrf.mxu0
      %275 = vdwg.mxu0
      %276 = vadd.xlane.f32.xlu0 %v271
      %v277 = vpop.xlane.xlu0 %276
      %vm278 = vcmask 7168
      %279 = vst.msk [vmem:[%s211] sm:$0xff] %vm278, %v277
      %v280 = vmul.f32 %v271, %v271
      %281 = vadd.xlane.f32.xlu0 %v280
      %v282 = vpop.xlane.xlu0 %281
      %283 = vst.msk [vmem:[%s218] sm:$0xff] %vm278, %v282
      %p284 = scmp.lt.s32.totalorder %s19, 1
      %s285 = scalar_select %p284, %s19, 1
      %p286 = scmp.lt.s32.totalorder %s20, 0
      %s287 = scalar_select %p286, %s20, 0
      %s288 = sadd.s32 %s287, %s285
      %s289 = smul.addr %s288, 8
      %s290 = scalar_lea.vmem %s2, %s289
      %p291 = scmp.lt.s32.totalorder %s19, 1
      %s292 = scalar_select %p291, %s19, 1
      %p293 = scmp.lt.s32.totalorder %s20, 0
      %s294 = scalar_select %p293, %s20, 0
      %s295 = sadd.s32 %s294, %s292
      %s296 = smul.addr %s295, 8
      %s297 = scalar_lea.vmem %s3, %s296
      // Predicated region
      $region29: #{tpu_custom_call.1} parent=27 // pred_check
        %p298 = pneg %p96
      $region30: #{tpu_custom_call.1} parent=27 // pred_check_branch
        %300 = sbr.rel (%p298) target = $region32
      $region31: #{tpu_custom_call.1} parent=27 // pred_region
        _
      $region32: #{tpu_custom_call.1} parent=27 // pred_fallthru
        _
      // Predicated region
      $region33: #{tpu_custom_call.1} parent=27 // pred_check
        %p301 = pneg %p124
      $region34: #{tpu_custom_call.1} parent=27 // pred_check_branch
        %303 = sbr.rel (%p301) target = $region36
      $region35: #{tpu_custom_call.1} parent=27 // pred_region
        _
      $region36: #{tpu_custom_call.1} parent=27 // pred_fallthru
        _
    $region28: #{tpu_custom_call.1} parent=5 // pred_fallthru
      _
    %p304 = scmp.le.s32.totalorder 2, %s10
    // Predicated region
    $region37: #{tpu_custom_call.1} parent=5 // pred_check
      %p305 = pneg %p304
    $region38: #{tpu_custom_call.1} parent=5 // pred_check_branch
      %307 = sbr.rel (%p305) target = $region40
    $region39: #{tpu_custom_call.1} parent=5 // pred_region
      %s308 = ssub.s32 %s10, 2
      // Predicated region
      $region41: #{tpu_custom_call.1} parent=39 // pred_check
        %p309 = pneg %p102
      $region42: #{tpu_custom_call.1} parent=39 // pred_check_branch
        %311 = sbr.rel (%p309) target = $region44
      $region43: #{tpu_custom_call.1} parent=39 // pred_region
        %p312 = scmp.lt.s32.totalorder %s21, 1
        %s313 = scalar_select %p312, %s21, 1
        %p314 = scmp.lt.s32.totalorder %s22, 0
        %s315 = scalar_select %p314, %s22, 0
        %s316 = sadd.s32 %s315, %s313
        %s317 = smul.addr %s316, 8
        %s318 = scalar_lea.vmem %s2, %s317
      $region44: #{tpu_custom_call.1} parent=39 // pred_fallthru
        _
      // Predicated region
      $region45: #{tpu_custom_call.1} parent=39 // pred_check
        %p319 = pneg %p130
      $region46: #{tpu_custom_call.1} parent=39 // pred_check_branch
        %321 = sbr.rel (%p319) target = $region48
      $region47: #{tpu_custom_call.1} parent=39 // pred_region
        %p322 = scmp.lt.s32.totalorder %s21, 1
        %s323 = scalar_select %p322, %s21, 1
        %p324 = scmp.lt.s32.totalorder %s22, 0
        %s325 = scalar_select %p324, %s22, 0
        %s326 = sadd.s32 %s325, %s323
        %s327 = smul.addr %s326, 8
        %s328 = scalar_lea.vmem %s3, %s327
      $region48: #{tpu_custom_call.1} parent=39 // pred_fallthru
        _
    $region40: #{tpu_custom_call.1} parent=5 // pred_fallthru
      _
  $region6: #{tpu_custom_call.1} parent=0 // loop_footer
    %s14 = sadd.s32 1, %s10
  $region7: #{tpu_custom_call.1} parent=0 // loop_footer_branch
    %9 = sbr.rel target = $region3
  $region8: #{tpu_custom_call.1} parent=0 // loop_exit
    _

</llo_original>
